<compile_context>
chip_gen: v7x
topology: tpu7x:2x2x1
jax: 0.10.0
libtpu: 0.0.40
codegen_flags: <defaults>
</compile_context>

<pallas_src>
import functools

import jax
import jax.numpy as jnp
from jax.experimental import pallas as pl
from jax.experimental.pallas import tpu as pltpu

LANE = 128     # vreg lane width  -> pad the hidden feature dim to this
SUBLANE = 16   # batch-tile multiple (covers both f32 (8) and bf16 (16) sublane packing)


def _round_up(n, m):
    return ((n + m - 1) // m) * m


def _mlp_kernel(x_ref, w1_ref, b1_ref, w2_ref, b2_ref, o_ref):
    # In-kernel cast of the streamed activation tile (f32 -> bf16 on the VPU, hidden under DMA).
    x = x_ref[...].astype(w1_ref.dtype)
    # Hidden layer: relu(x @ W1 + b1). bf16 operands, f32 accumulation on the MXU.
    h = jnp.dot(x, w1_ref[...], preferred_element_type=jnp.float32)
    h = jnp.maximum(h + b1_ref[...], 0.0)                      # bias add + ReLU in f32 (VPU)
    # Output layer: h @ W2 + b2. Compact N = n_output columns; store straight to the o_ref tile.
    y = jnp.dot(h.astype(w2_ref.dtype), w2_ref[...],
                preferred_element_type=jnp.float32)
    o_ref[...] = (y + b2_ref[...]).astype(o_ref.dtype)


def prepare_params(w1, b1, w2, b2, compute_dtype=jnp.bfloat16):
    """One-time parameter prep (NOT on the per-call critical path).

    Takes torch.nn.Linear-layout params (w: (out, in), b: (out,)) and returns:
      w1: (F, Hp)  compute_dtype,  b1: (1, Hp) f32,
      w2: (Hp, O)  compute_dtype,  b2: (1, O)  f32,
    with Hp = n_hidden zero-padded to a multiple of 128 lanes and O = n_output kept compact.
    Zero padding of the hidden dim is exact: relu(0 + 0) = 0 contributes nothing downstream.
    """
    H, F = w1.shape
    O, H2 = w2.shape
    assert H2 == H
    Hp = _round_up(H, LANE)
    w1_t = jnp.pad(jnp.transpose(w1).astype(compute_dtype), ((0, 0), (0, Hp - H)))
    w2_t = jnp.pad(jnp.transpose(w2).astype(compute_dtype), ((0, Hp - H), (0, 0)))
    b1_p = jnp.pad(b1.astype(jnp.float32), (0, Hp - H)).reshape(1, Hp)
    b2_p = b2.astype(jnp.float32).reshape(1, O)
    return {"w1": w1_t, "b1": b1_p, "w2": w2_t, "b2": b2_p}


@functools.partial(jax.jit, static_argnames=("block_b",))
def net_forward(x, params, *, block_b=512):
    """Forward pass matching torch: out(relu(hidden(x))).

    x: (B, n_feature) float32. `params` from prepare_params. Returns (B, n_output) float32.
    """
    B, F = x.shape
    w1, b1, w2, b2 = params["w1"], params["b1"], params["w2"], params["b2"]
    F_w, Hp = w1.shape
    assert F_w == F
    _, O = w2.shape

    # Batch tile: multiple of the sublane packing, capped by block_b and the (padded) batch.
    # Small batches (<= block_b) collapse to a single grid step; large batches get several
    # independent "parallel" tiles (sharded across TensorCores on v7x).
    TB = min(_round_up(block_b, SUBLANE), _round_up(B, SUBLANE))
    Bp = _round_up(B, TB)

    xc = x
    if Bp != B:  # only pad when the batch isn't already a tile multiple (demo skips this)
        xc = jnp.pad(xc, ((0, Bp - B), (0, 0)))

    grid = (Bp // TB,)

    out = pl.pallas_call(
        _mlp_kernel,
        out_shape=jax.ShapeDtypeStruct((Bp, O), jnp.float32),
        grid_spec=pltpu.PrefetchScalarGridSpec(
            num_scalar_prefetch=0,
            grid=grid,
            in_specs=[
                pl.BlockSpec((TB, F), lambda i: (i, 0)),    # activations: streamed per batch tile
                pl.BlockSpec((F, Hp), lambda i: (0, 0)),    # W1: VMEM-resident across the grid
                pl.BlockSpec((1, Hp), lambda i: (0, 0)),    # b1: resident
                pl.BlockSpec((Hp, O), lambda i: (0, 0)),    # W2: resident (compact output cols)
                pl.BlockSpec((1, O), lambda i: (0, 0)),     # b2: resident
            ],
            # Compact (TB, n_output) output block: masked stores, but ~32x fewer HBM write bytes
            # than a 128-lane padded slab, and no post-kernel column-slice pass.
            out_specs=pl.BlockSpec((TB, O), lambda i: (i, 0)),
        ),
        compiler_params=pltpu.CompilerParams(
            # Batch tiles are independent -> shardable across TensorCores (2x on v7x).
            dimension_semantics=("parallel",),
            # Default scoped-VMEM limit is plenty: footprint is a few MiB even at TB=1024.
        ),
    )(xc, w1, b1, w2, b2)

    # Strip padded batch rows only if we padded (static condition, no-op for the common case).
    return out if Bp == B else out[:B]


def _init_linear(key, out_features, in_features):
    # Deterministic init mimicking torch.nn.Linear default (uniform +/- 1/sqrt(in_features)).
    kw, kb = jax.random.split(key)
    bound = 1.0 / jnp.sqrt(jnp.float32(in_features))
    w = jax.random.uniform(kw, (out_features, in_features), jnp.float32, -bound, bound)
    b = jax.random.uniform(kb, (out_features,), jnp.float32, -bound, bound)
    return w, b


if __name__ == "__main__":
    n_feature, n_hidden, n_output = 16, 32, 4
    batch = 64

    key = jax.random.PRNGKey(0)
    kx, k1, k2 = jax.random.split(key, 3)

    x = jax.random.normal(kx, (batch, n_feature), jnp.float32)
    w1, b1 = _init_linear(k1, n_hidden, n_feature)   # hidden: Linear(n_feature, n_hidden)
    w2, b2 = _init_linear(k2, n_output, n_hidden)    # out:    Linear(n_hidden, n_output)

    params = prepare_params(w1, b1, w2, b2, compute_dtype=jnp.bfloat16)

    # Default block_b=512 -> the whole B=64 batch runs as a single grid step (no pad, no slice).
    out = net_forward(x, params)
    jax.block_until_ready(out)

    # Reference: the true f32 torch-equivalent model. Looser tolerance accounts for bf16-rounded
    # matmul operands inside the kernel (accumulation is f32).
    h_ref = jnp.maximum(x @ w1.T + b1, 0.0)
    ref = h_ref @ w2.T + b2

    assert out.shape == (batch, n_output), out.shape
    err = float(jnp.max(jnp.abs(out - ref)))
    assert jnp.allclose(out, ref, atol=3e-2, rtol=3e-2), err

    print("KERNEL_OK")
</pallas_src>

<mosaic_0001>
module attributes {stable_mosaic.version = 11 : i64} {
  func.func @_mlp_kernel(%arg0: i32, %arg1: memref<64x16xf32, #tpu.memory_space<vmem>>, %arg2: memref<16x128xbf16, #tpu.memory_space<vmem>>, %arg3: memref<1x128xf32, #tpu.memory_space<vmem>>, %arg4: memref<128x4xbf16, #tpu.memory_space<vmem>>, %arg5: memref<1x4xf32, #tpu.memory_space<vmem>>, %arg6: memref<64x4xf32, #tpu.memory_space<vmem>>) attributes {dimension_semantics = [#tpu.dimension_semantics<parallel>], iteration_bounds = array<i64: 1>, scalar_prefetch = 0 : i64, scratch_operands = 0 : i64, tpu.core_type = #tpu.core_type<tc>, window_params = [{transform_indices = @transform_0, window_bounds = array<i64: 64, 16>}, {pipeline_mode = #tpu.pipeline_mode<synchronous>, transform_indices = @transform_1, window_bounds = array<i64: 16, 128>}, {pipeline_mode = #tpu.pipeline_mode<synchronous>, transform_indices = @transform_2, window_bounds = array<i64: 1, 128>}, {pipeline_mode = #tpu.pipeline_mode<synchronous>, transform_indices = @transform_3, window_bounds = array<i64: 128, 4>}, {pipeline_mode = #tpu.pipeline_mode<synchronous>, transform_indices = @transform_4, window_bounds = array<i64: 1, 4>}, {transform_indices = @transform_5, window_bounds = array<i64: 64, 4>}]} {
    %c0 = arith.constant 0 : index
    %c0_0 = arith.constant 0 : index
    %0 = vector.load %arg1[%c0, %c0_0] : memref<64x16xf32, #tpu.memory_space<vmem>>, vector<64x16xf32>
    %1 = arith.truncf %0 : vector<64x16xf32> to vector<64x16xbf16>
    %c0_1 = arith.constant 0 : index
    %c0_2 = arith.constant 0 : index
    %2 = vector.load %arg2[%c0_1, %c0_2] : memref<16x128xbf16, #tpu.memory_space<vmem>>, vector<16x128xbf16>
    %cst = arith.constant dense<0.000000e+00> : vector<64x128xf32>
    %3 = tpu.matmul %1, %2, %cst {dimension_numbers = #tpu.dot_dimension_numbers<[1], [0], [0], [1], [0, 0, 1, 1], [], []>} : vector<64x16xbf16>, vector<16x128xbf16>, vector<64x128xf32> -> vector<64x128xf32>
    %c0_3 = arith.constant 0 : index
    %c0_4 = arith.constant 0 : index
    %4 = vector.load %arg3[%c0_3, %c0_4] : memref<1x128xf32, #tpu.memory_space<vmem>>, vector<1x128xf32>
    %5 = vector.broadcast %4 : vector<1x128xf32> to vector<64x128xf32>
    %6 = arith.addf %3, %5 : vector<64x128xf32>
    %cst_5 = arith.constant 0.000000e+00 : f32
    %7 = vector.broadcast %cst_5 : f32 to vector<64x128xf32>
    %8 = arith.maximumf %6, %7 : vector<64x128xf32>
    %9 = arith.truncf %8 : vector<64x128xf32> to vector<64x128xbf16>
    %c0_6 = arith.constant 0 : index
    %c0_7 = arith.constant 0 : index
    %10 = vector.load %arg4[%c0_6, %c0_7] : memref<128x4xbf16, #tpu.memory_space<vmem>>, vector<128x4xbf16>
    %cst_8 = arith.constant dense<0.000000e+00> : vector<64x4xf32>
    %11 = tpu.matmul %9, %10, %cst_8 {dimension_numbers = #tpu.dot_dimension_numbers<[1], [0], [0], [1], [0, 0, 1, 1], [], []>} : vector<64x128xbf16>, vector<128x4xbf16>, vector<64x4xf32> -> vector<64x4xf32>
    %c0_9 = arith.constant 0 : index
    %c0_10 = arith.constant 0 : index
    %12 = vector.load %arg5[%c0_9, %c0_10] : memref<1x4xf32, #tpu.memory_space<vmem>>, vector<1x4xf32>
    %13 = vector.broadcast %12 : vector<1x4xf32> to vector<64x4xf32>
    %14 = arith.addf %11, %13 : vector<64x4xf32>
    %c0_11 = arith.constant 0 : index
    %c0_12 = arith.constant 0 : index
    %15 = vector.load %arg6[%c0_11, %c0_12] : memref<64x4xf32, #tpu.memory_space<vmem>>, vector<64x4xf32>
    tpu.vector_store %arg6[%c0_11, %c0_12], %14 {strides = array<i32>} : memref<64x4xf32, #tpu.memory_space<vmem>>, vector<64x4xf32>,
    return
  }
  func.func @transform_0(%arg0: i32) -> (i32, i32) {
    %c0_i32 = arith.constant 0 : i32
    %c0_i32_0 = arith.constant 0 : i32
    return %arg0, %c0_i32 : i32, i32
  }
  func.func @transform_1(%arg0: i32) -> (i32, i32) {
    %c0_i32 = arith.constant 0 : i32
    %c0_i32_0 = arith.constant 0 : i32
    %c0_i32_1 = arith.constant 0 : i32
    return %c0_i32, %c0_i32_0 : i32, i32
  }
  func.func @transform_2(%arg0: i32) -> (i32, i32) {
    %c0_i32 = arith.constant 0 : i32
    %c0_i32_0 = arith.constant 0 : i32
    %c0_i32_1 = arith.constant 0 : i32
    return %c0_i32, %c0_i32_0 : i32, i32
  }
  func.func @transform_3(%arg0: i32) -> (i32, i32) {
    %c0_i32 = arith.constant 0 : i32
    %c0_i32_0 = arith.constant 0 : i32
    %c0_i32_1 = arith.constant 0 : i32
    return %c0_i32, %c0_i32_0 : i32, i32
  }
  func.func @transform_4(%arg0: i32) -> (i32, i32) {
    %c0_i32 = arith.constant 0 : i32
    %c0_i32_0 = arith.constant 0 : i32
    %c0_i32_1 = arith.constant 0 : i32
    return %c0_i32, %c0_i32_0 : i32, i32
  }
  func.func @transform_5(%arg0: i32) -> (i32, i32) {
    %c0_i32 = arith.constant 0 : i32
    %c0_i32_0 = arith.constant 0 : i32
    return %arg0, %c0_i32 : i32, i32
  }
}

</mosaic_0001>

<llo_original>
// kernel: net_forward.1
$region0: #{net_forward.1}
  #allocation0 [shape = 'u32[]', space=smem, size = 0x4, offset = 0x4, fixed_abs, tag = 'smem constant byte address 0x4 - core index']
  #allocation1 [shape = 'u32[144,128]{1,0:T(1,128)}', space=vmem, size = 0x12000, scoped, tag = 'internal scratch']
  %s0 = inlined_call_operand.vmem [shape: f32[64,16], index: 0, kind: input, shape index: {}]
  %s1 = inlined_call_operand.vmem [shape: bf16[16,128], index: 1, kind: input, shape index: {}]
  %s2 = inlined_call_operand.vmem [shape: f32[1,128], index: 2, kind: input, shape index: {}]
  %s3 = inlined_call_operand.vmem [shape: bf16[128,4], index: 3, kind: input, shape index: {}]
  %s4 = inlined_call_operand.vmem [shape: f32[1,4], index: 4, kind: input, shape index: {}]
  %s5 = inlined_call_operand.vmem [shape: f32[64,4], index: 5, kind: output, shape index: {}]
  %s6 = sld [smem:[#allocation0]]
  $region30: #{net_forward.1} parent=0
    _
  %s8 = ssub.s32 1, %s6
  %s9 = scalar_select 0, %s8, %s6
  // Predicated region
  $region2: #{net_forward.1} parent=0 // pred_check
    _
  $region3: #{net_forward.1} parent=0 // pred_check_branch
    %11 = sbr.rel (0) target = $region5
  $region4: #{net_forward.1} parent=0 // pred_region
    _
  $region5: #{net_forward.1} parent=0 // pred_fallthru
    _
  // Predicated region
  $region6: #{net_forward.1} parent=0 // pred_check
    _
  $region7: #{net_forward.1} parent=0 // pred_check_branch
    %13 = sbr.rel (0) target = $region9
  $region8: #{net_forward.1} parent=0 // pred_region
    _
  $region9: #{net_forward.1} parent=0 // pred_fallthru
    _
  // Predicated region
  $region10: #{net_forward.1} parent=0 // pred_check
    _
  $region11: #{net_forward.1} parent=0 // pred_check_branch
    %15 = sbr.rel (0) target = $region13
  $region12: #{net_forward.1} parent=0 // pred_region
    _
  $region13: #{net_forward.1} parent=0 // pred_fallthru
    _
  // Predicated region
  $region14: #{net_forward.1} parent=0 // pred_check
    _
  $region15: #{net_forward.1} parent=0 // pred_check_branch
    %17 = sbr.rel (0) target = $region17
  $region16: #{net_forward.1} parent=0 // pred_region
    _
  $region17: #{net_forward.1} parent=0 // pred_fallthru
    _
  // Predicated region
  $region18: #{net_forward.1} parent=0 // pred_check
    _
  $region19: #{net_forward.1} parent=0 // pred_check_branch
    %19 = sbr.rel (0) target = $region21
  $region20: #{net_forward.1} parent=0 // pred_region
    _
  $region21: #{net_forward.1} parent=0 // pred_fallthru
    _
  %v21 = vld [vmem:[%s0] sm:$0xff]
  %v22 = vld [vmem:[%s0 + $0x8] sm:$0xff]
  %v23 = vld [vmem:[%s0 + $0x10] sm:$0xff]
  %v24 = vld [vmem:[%s0 + $0x18] sm:$0xff]
  %v25 = vld [vmem:[%s0 + $0x20] sm:$0xff]
  %v26 = vld [vmem:[%s0 + $0x28] sm:$0xff]
  %v27 = vld [vmem:[%s0 + $0x30] sm:$0xff]
  %v28 = vld [vmem:[%s0 + $0x38] sm:$0xff]
  %v29 = vpack.c.bf16 %v22, %v21
  %v30 = vpack.c.bf16 %v24, %v23
  %v31 = vpack.c.bf16 %v26, %v25
  %v32 = vpack.c.bf16 %v28, %v27
  %v33 = vld [vmem:[%s1] sm:$0xf]
  %v34 = vld [vmem:[%s1 + $0x4] sm:$0xf]
  %v35 = vld [vmem:[%s2] sm:$0x1]
  %v37 = vlaneseq
  %v38 = vshrl.u32 %v37, 7
  %v39 = vsub.s32 0, %v38
  %v40 = vrot.slane %v35, %v39
  %v44 = vunpack.c.l.b16 %v33
  %v45 = vunpack.c.l.b16 %v34
  %v46 = vpack.c.b16 %v45, %v44
  %vm48 = vcmask 130048
  %v50 = vsel %vm48, %v29, 0
  %v53 = vsel %vm48, %v30, 0
  %v56 = vsel %vm48, %v31, 0
  %v59 = vsel %vm48, %v32, 0
  %61 = vmatprep.subr.bf16.mxu0 0
  %62 = vmatpush1.bf16.msra.mxu0 %v46
  %63 = vmatprep.subr.bf16.mxu0 0
  %64 = vmatpush1.bf16.msra.mxu0 0
  %65 = vmatprep.subr.bf16.mxu0 0
  %66 = vmatpush1.bf16.msra.mxu0 0
  %67 = vmatprep.subr.bf16.mxu0 0
  %68 = vmatpush1.bf16.msra.mxu0 0
  %69 = vmatprep.subr.bf16.mxu0 0
  %70 = vmatpush1.bf16.msra.mxu0 0
  %71 = vmatprep.subr.bf16.mxu0 0
  %72 = vmatpush1.bf16.msra.mxu0 0
  %73 = vmatprep.subr.bf16.mxu0 0
  %74 = vmatpush1.bf16.msra.mxu0 0
  %75 = vmatprep.subr.bf16.mxu0 0
  %76 = vmatpush1.bf16.msra.mxu0 0
  %77 = vmatprep.subr.bf16.mxu0 0
  %78 = vmatpush1.bf16.msra.mxu0 0
  %79 = vmatprep.subr.bf16.mxu0 0
  %80 = vmatpush1.bf16.msra.mxu0 0
  %81 = vmatprep.subr.bf16.mxu0 0
  %82 = vmatpush1.bf16.msra.mxu0 0
  %83 = vmatprep.subr.bf16.mxu0 0
  %84 = vmatpush1.bf16.msra.mxu0 0
  %85 = vmatprep.subr.bf16.mxu0 0
  %86 = vmatpush1.bf16.msra.mxu0 0
  %87 = vmatprep.subr.bf16.mxu0 0
  %88 = vmatpush1.bf16.msra.mxu0 0
  %89 = vmatprep.subr.bf16.mxu0 0
  %90 = vmatpush1.bf16.msra.mxu0 0
  %91 = vmatprep.subr.bf16.mxu0 0
  %92 = vmatpush1.bf16.msra.mxu0 0
  %93 = vmatprep.mubr.bf16.mxu0 0
  %94 = vmatmul.mubr.bf16.gmra.mrb[0].mxu0 %v50
  %v95 = vpop.f32.mrb[0].mxu0
  %v96 = vadd.f32 %v40, %v95
  %v97 = vpop.f32.mrb[0].mxu0
  %v98 = vpop.f32.mrb[0].mxu0
  %v99 = vadd.f32 %v40, %v98
  %v100 = vpop.f32.mrb[0].mxu0
  %101 = vmatprep.mubr.bf16.mxu0 0
  %102 = vmatmul.mubr.bf16.gmra.mrb[0].mxu0 %v53
  %v103 = vpop.f32.mrb[0].mxu0
  %v104 = vadd.f32 %v40, %v103
  %v105 = vpop.f32.mrb[0].mxu0
  %v106 = vpop.f32.mrb[0].mxu0
  %v107 = vadd.f32 %v40, %v106
  %v108 = vpop.f32.mrb[0].mxu0
  %109 = vmatprep.mubr.bf16.mxu0 0
  %110 = vmatmul.mubr.bf16.gmra.mrb[0].mxu0 %v56
  %v111 = vpop.f32.mrb[0].mxu0
  %v112 = vadd.f32 %v40, %v111
  %v113 = vpop.f32.mrb[0].mxu0
  %v114 = vpop.f32.mrb[0].mxu0
  %v115 = vadd.f32 %v40, %v114
  %v116 = vpop.f32.mrb[0].mxu0
  %117 = vmatprep.mubr.bf16.mxu0 0
  %118 = vmatmul.mubr.bf16.gmra.mrb[0].mxu0 %v59
  %v119 = vpop.f32.mrb[0].mxu0
  %v120 = vadd.f32 %v40, %v119
  %v121 = vpop.f32.mrb[0].mxu0
  %v122 = vpop.f32.mrb[0].mxu0
  %v123 = vadd.f32 %v40, %v122
  %v124 = vpop.f32.mrb[0].mxu0
  %125 = vdwg.mxu0
  %v126 = vmax.f32 %v96, 0.0
  %v127 = vmax.f32 %v99, 0.0
  %v128 = vmax.f32 %v104, 0.0
  %v129 = vmax.f32 %v107, 0.0
  %v130 = vmax.f32 %v112, 0.0
  %v131 = vmax.f32 %v115, 0.0
  %v132 = vmax.f32 %v120, 0.0
  %v133 = vmax.f32 %v123, 0.0
  %v134 = vpack.c.bf16 %v127, %v126
  %v135 = vpack.c.bf16 %v129, %v128
  %v136 = vpack.c.bf16 %v131, %v130
  %v137 = vpack.c.bf16 %v133, %v132
  %v138 = vld [vmem:[%s3] sm:$0xf]
  %v139 = vld [vmem:[%s3 + $0x4] sm:$0xf]
  %v140 = vld [vmem:[%s3 + $0x8] sm:$0xf]
  %v141 = vld [vmem:[%s3 + $0xc] sm:$0xf]
  %v142 = vld [vmem:[%s3 + $0x10] sm:$0xf]
  %v143 = vld [vmem:[%s3 + $0x14] sm:$0xf]
  %v144 = vld [vmem:[%s3 + $0x18] sm:$0xf]
  %v145 = vld [vmem:[%s3 + $0x1c] sm:$0xf]
  %v146 = vld [vmem:[%s3 + $0x20] sm:$0xf]
  %v147 = vld [vmem:[%s3 + $0x24] sm:$0xf]
  %v148 = vld [vmem:[%s3 + $0x28] sm:$0xf]
  %v149 = vld [vmem:[%s3 + $0x2c] sm:$0xf]
  %v150 = vld [vmem:[%s3 + $0x30] sm:$0xf]
  %v151 = vld [vmem:[%s3 + $0x34] sm:$0xf]
  %v152 = vld [vmem:[%s3 + $0x38] sm:$0xf]
  %v153 = vld [vmem:[%s3 + $0x3c] sm:$0xf]
  %v154 = vld [vmem:[%s4] sm:$0x1]
  %v156 = vlaneseq
  %v157 = vshrl.u32 %v156, 7
  %v158 = vsub.s32 0, %v157
  %v159 = vrot.slane %v154, %v158
  %v177 = vunpack.c.l.b16 %v138
  %v178 = vunpack.c.l.b16 %v139
  %v179 = vunpack.c.l.b16 %v140
  %v180 = vunpack.c.l.b16 %v141
  %v181 = vunpack.c.l.b16 %v142
  %v182 = vunpack.c.l.b16 %v143
  %v183 = vunpack.c.l.b16 %v144
  %v184 = vunpack.c.l.b16 %v145
  %v185 = vunpack.c.l.b16 %v146
  %v186 = vunpack.c.l.b16 %v147
  %v187 = vunpack.c.l.b16 %v148
  %v188 = vunpack.c.l.b16 %v149
  %v189 = vunpack.c.l.b16 %v150
  %v190 = vunpack.c.l.b16 %v151
  %v191 = vunpack.c.l.b16 %v152
  %v192 = vunpack.c.l.b16 %v153
  %v193 = vpack.c.b16 %v178, %v177
  %v194 = vpack.c.b16 %v180, %v179
  %v195 = vpack.c.b16 %v182, %v181
  %v196 = vpack.c.b16 %v184, %v183
  %v197 = vpack.c.b16 %v186, %v185
  %v198 = vpack.c.b16 %v188, %v187
  %v199 = vpack.c.b16 %v190, %v189
  %v200 = vpack.c.b16 %v192, %v191
  %209 = vmatprep.subr.bf16.mxu0 0
  %210 = vmatpush1.bf16.msra.mxu0 %v193
  %211 = vmatprep.subr.bf16.mxu0 0
  %212 = vmatpush1.bf16.msra.mxu0 %v194
  %213 = vmatprep.subr.bf16.mxu0 0
  %214 = vmatpush1.bf16.msra.mxu0 %v195
  %215 = vmatprep.subr.bf16.mxu0 0
  %216 = vmatpush1.bf16.msra.mxu0 %v196
  %217 = vmatprep.subr.bf16.mxu0 0
  %218 = vmatpush1.bf16.msra.mxu0 %v197
  %219 = vmatprep.subr.bf16.mxu0 0
  %220 = vmatpush1.bf16.msra.mxu0 %v198
  %221 = vmatprep.subr.bf16.mxu0 0
  %222 = vmatpush1.bf16.msra.mxu0 %v199
  %223 = vmatprep.subr.bf16.mxu0 0
  %224 = vmatpush1.bf16.msra.mxu0 %v200
  %225 = vmatprep.subr.bf16.mxu0 0
  %226 = vmatpush1.bf16.msra.mxu0 0
  %227 = vmatprep.subr.bf16.mxu0 0
  %228 = vmatpush1.bf16.msra.mxu0 0
  %229 = vmatprep.subr.bf16.mxu0 0
  %230 = vmatpush1.bf16.msra.mxu0 0
  %231 = vmatprep.subr.bf16.mxu0 0
  %232 = vmatpush1.bf16.msra.mxu0 0
  %233 = vmatprep.subr.bf16.mxu0 0
  %234 = vmatpush1.bf16.msra.mxu0 0
  %235 = vmatprep.subr.bf16.mxu0 0
  %236 = vmatpush1.bf16.msra.mxu0 0
  %237 = vmatprep.subr.bf16.mxu0 0
  %238 = vmatpush1.bf16.msra.mxu0 0
  %239 = vmatprep.subr.bf16.mxu0 0
  %240 = vmatpush1.bf16.msra.mxu0 0
  %241 = vmatprep.mubr.bf16.mxu0 0
  %242 = vmatmul.mubr.bf16.gmra.mrb[0].mxu0 %v134
  %v243 = vpop.f32.mrb[0].mxu0
  %v244 = vadd.f32 %v159, %v243
  %v245 = vpop.f32.mrb[0].mxu0
  %v246 = vpop.f32.mrb[0].mxu0
  %v247 = vadd.f32 %v159, %v246
  %v248 = vpop.f32.mrb[0].mxu0
  %249 = vmatprep.mubr.bf16.mxu0 0
  %250 = vmatmul.mubr.bf16.gmra.mrb[0].mxu0 %v135
  %v251 = vpop.f32.mrb[0].mxu0
  %v252 = vadd.f32 %v159, %v251
  %v253 = vpop.f32.mrb[0].mxu0
  %v254 = vpop.f32.mrb[0].mxu0
  %v255 = vadd.f32 %v159, %v254
  %v256 = vpop.f32.mrb[0].mxu0
  %257 = vmatprep.mubr.bf16.mxu0 0
  %258 = vmatmul.mubr.bf16.gmra.mrb[0].mxu0 %v136
  %v259 = vpop.f32.mrb[0].mxu0
  %v260 = vadd.f32 %v159, %v259
  %v261 = vpop.f32.mrb[0].mxu0
  %v262 = vpop.f32.mrb[0].mxu0
  %v263 = vadd.f32 %v159, %v262
  %v264 = vpop.f32.mrb[0].mxu0
  %265 = vmatprep.mubr.bf16.mxu0 0
  %266 = vmatmul.mubr.bf16.gmra.mrb[0].mxu0 %v137
  %v267 = vpop.f32.mrb[0].mxu0
  %v268 = vadd.f32 %v159, %v267
  %v269 = vpop.f32.mrb[0].mxu0
  %v270 = vpop.f32.mrb[0].mxu0
  %v271 = vadd.f32 %v159, %v270
  %v272 = vpop.f32.mrb[0].mxu0
  %273 = vdwg.mxu0
  %vm274 = vcmask 31744
  %275 = vst.msk [vmem:[%s5] sm:$0xff] %vm274, %v244
  %276 = vst.msk [vmem:[%s5 + $0x8] sm:$0xff] %vm274, %v247
  %277 = vst.msk [vmem:[%s5 + $0x10] sm:$0xff] %vm274, %v252
  %278 = vst.msk [vmem:[%s5 + $0x18] sm:$0xff] %vm274, %v255
  %279 = vst.msk [vmem:[%s5 + $0x20] sm:$0xff] %vm274, %v260
  %280 = vst.msk [vmem:[%s5 + $0x28] sm:$0xff] %vm274, %v263
  %281 = vst.msk [vmem:[%s5 + $0x30] sm:$0xff] %vm274, %v268
  %282 = vst.msk [vmem:[%s5 + $0x38] sm:$0xff] %vm274, %v271
  // Predicated region
  $region22: #{net_forward.1} parent=0 // pred_check
    _
  $region23: #{net_forward.1} parent=0 // pred_check_branch
    %284 = sbr.rel (0) target = $region25
  $region24: #{net_forward.1} parent=0 // pred_region
    _
  $region25: #{net_forward.1} parent=0 // pred_fallthru
    _
  // Predicated region
  $region26: #{net_forward.1} parent=0 // pred_check
    _
  $region27: #{net_forward.1} parent=0 // pred_check_branch
    %286 = sbr.rel (0) target = $region29
  $region28: #{net_forward.1} parent=0 // pred_region
    _
  $region29: #{net_forward.1} parent=0 // pred_fallthru
    _

</llo_original>
